<compile_context>
chip_gen: v5e
topology: v5e:2x2
jax: 0.10.0
libtpu: 0.0.40
codegen_flags: <defaults>
</compile_context>

<pallas_src>
import functools

import jax
import jax.numpy as jnp
from jax.experimental import pallas as pl
from jax.experimental.pallas import tpu as pltpu

# Hidden widths of the PyTorch module, and their lane-dense (x128) pads.
_H1, _H2 = 124, 24
_H1P, _H2P = 128, 128
_OUTP = 128  # padded output width -> lane-dense output stores


def _dqn_kernel(x_ref, w1_ref, b1_ref, w2_ref, b2_ref, w3_ref, b3_ref, o_ref):
    """Fused 3-layer MLP on one (TB, state_space) tile of the batch.

    Weights/biases are zero-padded to lane-dense widths (124->128, 24->128,
    action_space->128). Padded lanes stay exactly zero through bias-add and
    ReLU, so the valid output columns match the unpadded forward.
    """
    x = x_ref[...]

    h1 = jnp.dot(x, w1_ref[...], preferred_element_type=jnp.float32) + b1_ref[...]
    h1 = jnp.maximum(h1, 0.0)

    h2 = jnp.dot(h1, w2_ref[...], preferred_element_type=jnp.float32) + b2_ref[...]
    h2 = jnp.maximum(h2, 0.0)

    h3 = jnp.dot(h2, w3_ref[...], preferred_element_type=jnp.float32) + b3_ref[...]
    o_ref[...] = h3.astype(o_ref.dtype)


@functools.partial(jax.jit, static_argnames=("action_space", "block_b"))
def dqn_forward(x, padded_params, action_space, *, block_b=128):
    """DQNSolver forward. x: (B, state_space) f32 -> (B, action_space) f32."""
    w1, b1, w2, b2, w3, b3 = padded_params
    b, s = x.shape
    outp = w3.shape[1]  # padded output width (128)

    # Tile selection:
    #  * small batches (action selection / tiny minibatches): one tile whose
    #    row count is just the batch rounded to the 8-row sublane granule,
    #  * large batches: block_b-row tiles streamed through the grid.
    if b <= block_b:
        tb = max(8, ((b + 7) // 8) * 8)
        num_tiles = 1
    else:
        tb = block_b
        num_tiles = pl.cdiv(b, block_b)
    bp = num_tiles * tb
    if bp != b:
        x = jnp.pad(x, ((0, bp - b), (0, 0)))

    flops = 2 * bp * (s * _H1P + _H1P * _H2P + _H2P * outp)
    bytes_accessed = 4 * (
        bp * s + bp * outp
        + w1.size + b1.size + w2.size + b2.size + w3.size + b3.size
    )

    out = pl.pallas_call(
        _dqn_kernel,
        out_shape=jax.ShapeDtypeStruct((bp, outp), jnp.float32),
        grid_spec=pltpu.PrefetchScalarGridSpec(
            num_scalar_prefetch=0,
            grid=(num_tiles,),
            in_specs=[
                # Activations: one (tb, state_space) tile per grid step,
                # double-buffered HBM->VMEM by the Pallas pipeline.
                pl.BlockSpec((tb, s), lambda i: (i, 0)),
                # Weights / biases: constant block index -> fetched once and
                # resident in VMEM across all grid steps (~132 KB total).
                pl.BlockSpec(w1.shape, lambda i: (0, 0)),
                pl.BlockSpec(b1.shape, lambda i: (0, 0)),
                pl.BlockSpec(w2.shape, lambda i: (0, 0)),
                pl.BlockSpec(b2.shape, lambda i: (0, 0)),
                pl.BlockSpec(w3.shape, lambda i: (0, 0)),
                pl.BlockSpec(b3.shape, lambda i: (0, 0)),
            ],
            out_specs=pl.BlockSpec((tb, outp), lambda i: (i, 0)),
        ),
        compiler_params=pltpu.CompilerParams(
            # Batch tiles are independent -> shard across both TCs on v7x.
            dimension_semantics=("parallel",),
        ),
        cost_estimate=pl.CostEstimate(
            flops=flops, transcendentals=0, bytes_accessed=bytes_accessed
        ),
    )(x, w1, b1, w2, b2, w3, b3)

    # Slice away batch / output-lane padding (kernel store stays lane-dense).
    return out[:b, :action_space]


def init_params(key, state_space, action_space):
    """Deterministic synthetic parameters (PyTorch-Linear-like uniform init),
    in the original (unpadded) sizes."""
    ks = jax.random.split(key, 6)

    def lin(kw, kb, fan_in, fan_out):
        bound = 1.0 / jnp.sqrt(jnp.float32(fan_in))
        w = jax.random.uniform(kw, (fan_in, fan_out), jnp.float32, -bound, bound)
        b = jax.random.uniform(kb, (1, fan_out), jnp.float32, -bound, bound)
        return w, b

    w1, b1 = lin(ks[0], ks[1], state_space, _H1)
    w2, b2 = lin(ks[2], ks[3], _H1, _H2)
    w3, b3 = lin(ks[4], ks[5], _H2, action_space)
    return w1, b1, w2, b2, w3, b3


def pad_params(params):
    """Zero-pad hidden/output widths to lane-dense multiples of 128.

    Padding is zeros in both the weight columns and the matching next-layer
    rows (and bias entries), so padded lanes carry exact zeros end-to-end.
    """
    w1, b1, w2, b2, w3, b3 = params

    def pad2(a, rows, cols):
        return jnp.pad(a, ((0, rows - a.shape[0]), (0, cols - a.shape[1])))

    w1p = pad2(w1, w1.shape[0], _H1P)   # (S, 128)
    b1p = pad2(b1, 1, _H1P)             # (1, 128)
    w2p = pad2(w2, _H1P, _H2P)          # (128, 128)
    b2p = pad2(b2, 1, _H2P)             # (1, 128)
    w3p = pad2(w3, _H2P, _OUTP)         # (128, 128)
    b3p = pad2(b3, 1, _OUTP)            # (1, 128)
    return w1p, b1p, w2p, b2p, w3p, b3p


def _ref_forward(x, params):
    w1, b1, w2, b2, w3, b3 = params
    h = jnp.maximum(x @ w1 + b1, 0.0)
    h = jnp.maximum(h @ w2 + b2, 0.0)
    return h @ w3 + b3


if __name__ == "__main__":
    # CartPole-like sizes: state_space=4, action_space=2.
    state_space = 4
    action_space = 2

    key = jax.random.PRNGKey(0)
    k_x, k_x2, k_p = jax.random.split(key, 3)

    params = init_params(k_p, state_space, action_space)
    padded = pad_params(params)

    # Replay-buffer-sized batch -> two 128-row tiles through the grid.
    batch = 256
    x = jax.random.normal(k_x, (batch, state_space), jnp.float32)
    out = jax.block_until_ready(dqn_forward(x, padded, action_space))
    ref = _ref_forward(x, params)
    assert out.shape == (batch, action_space)
    assert jnp.allclose(out, ref, atol=1e-4, rtol=1e-4), float(
        jnp.max(jnp.abs(out - ref))
    )

    # Action-selection-sized batch -> single small sublane-aligned tile path.
    x_small = jax.random.normal(k_x2, (3, state_space), jnp.float32)
    out_small = jax.block_until_ready(dqn_forward(x_small, padded, action_space))
    ref_small = _ref_forward(x_small, params)
    assert out_small.shape == (3, action_space)
    assert jnp.allclose(out_small, ref_small, atol=1e-4, rtol=1e-4), float(
        jnp.max(jnp.abs(out_small - ref_small))
    )

    print("KERNEL_OK")
</pallas_src>

<mosaic_0001>
module attributes {stable_mosaic.version = 11 : i64} {
  func.func @_dqn_kernel(%arg0: i32, %arg1: memref<128x4xf32, #tpu.memory_space<vmem>>, %arg2: memref<4x128xf32, #tpu.memory_space<vmem>>, %arg3: memref<1x128xf32, #tpu.memory_space<vmem>>, %arg4: memref<128x128xf32, #tpu.memory_space<vmem>>, %arg5: memref<1x128xf32, #tpu.memory_space<vmem>>, %arg6: memref<128x128xf32, #tpu.memory_space<vmem>>, %arg7: memref<1x128xf32, #tpu.memory_space<vmem>>, %arg8: memref<128x128xf32, #tpu.memory_space<vmem>>) attributes {dimension_semantics = [#tpu.dimension_semantics<parallel>], iteration_bounds = array<i64: 2>, scalar_prefetch = 0 : i64, scratch_operands = 0 : i64, tpu.core_type = #tpu.core_type<tc>, window_params = [{transform_indices = @transform_0, window_bounds = array<i64: 128, 4>}, {pipeline_mode = #tpu.pipeline_mode<synchronous>, transform_indices = @transform_1, window_bounds = array<i64: 4, 128>}, {pipeline_mode = #tpu.pipeline_mode<synchronous>, transform_indices = @transform_2, window_bounds = array<i64: 1, 128>}, {pipeline_mode = #tpu.pipeline_mode<synchronous>, transform_indices = @transform_3, window_bounds = array<i64: 128, 128>}, {pipeline_mode = #tpu.pipeline_mode<synchronous>, transform_indices = @transform_4, window_bounds = array<i64: 1, 128>}, {pipeline_mode = #tpu.pipeline_mode<synchronous>, transform_indices = @transform_5, window_bounds = array<i64: 128, 128>}, {pipeline_mode = #tpu.pipeline_mode<synchronous>, transform_indices = @transform_6, window_bounds = array<i64: 1, 128>}, {transform_indices = @transform_7, window_bounds = array<i64: 128, 128>}]} {
    %c0 = arith.constant 0 : index
    %c0_0 = arith.constant 0 : index
    %0 = vector.load %arg1[%c0, %c0_0] : memref<128x4xf32, #tpu.memory_space<vmem>>, vector<128x4xf32>
    %c0_1 = arith.constant 0 : index
    %c0_2 = arith.constant 0 : index
    %1 = vector.load %arg2[%c0_1, %c0_2] : memref<4x128xf32, #tpu.memory_space<vmem>>, vector<4x128xf32>
    %cst = arith.constant dense<0.000000e+00> : vector<128x128xf32>
    %2 = tpu.matmul %0, %1, %cst {dimension_numbers = #tpu.dot_dimension_numbers<[1], [0], [0], [1], [0, 0, 1, 1], [], []>} : vector<128x4xf32>, vector<4x128xf32>, vector<128x128xf32> -> vector<128x128xf32>
    %c0_3 = arith.constant 0 : index
    %c0_4 = arith.constant 0 : index
    %3 = vector.load %arg3[%c0_3, %c0_4] : memref<1x128xf32, #tpu.memory_space<vmem>>, vector<1x128xf32>
    %4 = vector.broadcast %3 : vector<1x128xf32> to vector<128x128xf32>
    %5 = arith.addf %2, %4 : vector<128x128xf32>
    %cst_5 = arith.constant 0.000000e+00 : f32
    %6 = vector.broadcast %cst_5 : f32 to vector<128x128xf32>
    %7 = arith.maximumf %5, %6 : vector<128x128xf32>
    %c0_6 = arith.constant 0 : index
    %c0_7 = arith.constant 0 : index
    %8 = vector.load %arg4[%c0_6, %c0_7] : memref<128x128xf32, #tpu.memory_space<vmem>>, vector<128x128xf32>
    %cst_8 = arith.constant dense<0.000000e+00> : vector<128x128xf32>
    %9 = tpu.matmul %7, %8, %cst_8 {dimension_numbers = #tpu.dot_dimension_numbers<[1], [0], [0], [1], [0, 0, 1, 1], [], []>} : vector<128x128xf32>, vector<128x128xf32>, vector<128x128xf32> -> vector<128x128xf32>
    %c0_9 = arith.constant 0 : index
    %c0_10 = arith.constant 0 : index
    %10 = vector.load %arg5[%c0_9, %c0_10] : memref<1x128xf32, #tpu.memory_space<vmem>>, vector<1x128xf32>
    %11 = vector.broadcast %10 : vector<1x128xf32> to vector<128x128xf32>
    %12 = arith.addf %9, %11 : vector<128x128xf32>
    %cst_11 = arith.constant 0.000000e+00 : f32
    %13 = vector.broadcast %cst_11 : f32 to vector<128x128xf32>
    %14 = arith.maximumf %12, %13 : vector<128x128xf32>
    %c0_12 = arith.constant 0 : index
    %c0_13 = arith.constant 0 : index
    %15 = vector.load %arg6[%c0_12, %c0_13] : memref<128x128xf32, #tpu.memory_space<vmem>>, vector<128x128xf32>
    %cst_14 = arith.constant dense<0.000000e+00> : vector<128x128xf32>
    %16 = tpu.matmul %14, %15, %cst_14 {dimension_numbers = #tpu.dot_dimension_numbers<[1], [0], [0], [1], [0, 0, 1, 1], [], []>} : vector<128x128xf32>, vector<128x128xf32>, vector<128x128xf32> -> vector<128x128xf32>
    %c0_15 = arith.constant 0 : index
    %c0_16 = arith.constant 0 : index
    %17 = vector.load %arg7[%c0_15, %c0_16] : memref<1x128xf32, #tpu.memory_space<vmem>>, vector<1x128xf32>
    %18 = vector.broadcast %17 : vector<1x128xf32> to vector<128x128xf32>
    %19 = arith.addf %16, %18 : vector<128x128xf32>
    %c0_17 = arith.constant 0 : index
    %c0_18 = arith.constant 0 : index
    %20 = vector.load %arg8[%c0_17, %c0_18] : memref<128x128xf32, #tpu.memory_space<vmem>>, vector<128x128xf32>
    tpu.vector_store %arg8[%c0_17, %c0_18], %19 {strides = array<i32>} : memref<128x128xf32, #tpu.memory_space<vmem>>, vector<128x128xf32>,
    return
  }
  func.func @transform_0(%arg0: i32) -> (i32, i32) {
    %c0_i32 = arith.constant 0 : i32
    %c0_i32_0 = arith.constant 0 : i32
    return %arg0, %c0_i32 : i32, i32
  }
  func.func @transform_1(%arg0: i32) -> (i32, i32) {
    %c0_i32 = arith.constant 0 : i32
    %c0_i32_0 = arith.constant 0 : i32
    %c0_i32_1 = arith.constant 0 : i32
    return %c0_i32, %c0_i32_0 : i32, i32
  }
  func.func @transform_2(%arg0: i32) -> (i32, i32) {
    %c0_i32 = arith.constant 0 : i32
    %c0_i32_0 = arith.constant 0 : i32
    %c0_i32_1 = arith.constant 0 : i32
    return %c0_i32, %c0_i32_0 : i32, i32
  }
  func.func @transform_3(%arg0: i32) -> (i32, i32) {
    %c0_i32 = arith.constant 0 : i32
    %c0_i32_0 = arith.constant 0 : i32
    %c0_i32_1 = arith.constant 0 : i32
    return %c0_i32, %c0_i32_0 : i32, i32
  }
  func.func @transform_4(%arg0: i32) -> (i32, i32) {
    %c0_i32 = arith.constant 0 : i32
    %c0_i32_0 = arith.constant 0 : i32
    %c0_i32_1 = arith.constant 0 : i32
    return %c0_i32, %c0_i32_0 : i32, i32
  }
  func.func @transform_5(%arg0: i32) -> (i32, i32) {
    %c0_i32 = arith.constant 0 : i32
    %c0_i32_0 = arith.constant 0 : i32
    %c0_i32_1 = arith.constant 0 : i32
    return %c0_i32, %c0_i32_0 : i32, i32
  }
  func.func @transform_6(%arg0: i32) -> (i32, i32) {
    %c0_i32 = arith.constant 0 : i32
    %c0_i32_0 = arith.constant 0 : i32
    %c0_i32_1 = arith.constant 0 : i32
    return %c0_i32, %c0_i32_0 : i32, i32
  }
  func.func @transform_7(%arg0: i32) -> (i32, i32) {
    %c0_i32 = arith.constant 0 : i32
    %c0_i32_0 = arith.constant 0 : i32
    return %arg0, %c0_i32 : i32, i32
  }
}

</mosaic_0001>

<llo_original>
// kernel: dqn_forward.1
$region0: #{dqn_forward.1}
  #allocation0 [shape = 'u32[]', space=smem, size = 0x4, offset = 0x4, fixed_abs, tag = 'smem constant byte address 0x4 - core index']
  #allocation1 [shape = 'u32[72,128]{1,0:T(1,128)}', space=vmem, size = 0x9000, scoped, tag = 'internal scratch']
  %s0 = inlined_call_operand.vmem [shape: f32[256,4], index: 0, kind: input, shape index: {}]
  %s1 = inlined_call_operand.vmem [shape: f32[4,128], index: 1, kind: input, shape index: {}]
  %s2 = inlined_call_operand.vmem [shape: f32[1,128], index: 2, kind: input, shape index: {}]
  %s3 = inlined_call_operand.vmem [shape: f32[128,128], index: 3, kind: input, shape index: {}]
  %s4 = inlined_call_operand.vmem [shape: f32[1,128], index: 4, kind: input, shape index: {}]
  %s5 = inlined_call_operand.vmem [shape: f32[128,128], index: 5, kind: input, shape index: {}]
  %s6 = inlined_call_operand.vmem [shape: f32[1,128], index: 6, kind: input, shape index: {}]
  %s7 = inlined_call_operand.vmem [shape: f32[256,128], index: 7, kind: output, shape index: {}]
  %s8 = sld [smem:[#allocation0]]
  $region61: #{dqn_forward.1} parent=0
    _
  %s10 = ssub.s32 1, %s8
  %s11 = scalar_select 0, %s10, %s8
  loop: start=0, step=1, limit=4
  $region2: #{dqn_forward.1} parent=0 // loop_pre_header
    _
  $region3: #{dqn_forward.1} parent=0 // loop_header
    %s13 = sphi 0, %s17
    %p14 = scmp.ge.s32.totalorder %s13, 4
    %s23 = sphi 0, %s25
    %s26 = sphi 0, %s23
    %s27 = sphi 0, %s26
    %s43 = sphi 0, %s27
    %s47 = sphi 0, %s47
    %s49 = sphi 0, %s47
    %s50 = sphi 0, %s49
    %s64 = sphi 0, %s50
    %s68 = sphi 0, %s68
    %s70 = sphi 0, %s68
    %s71 = sphi 0, %s70
    %s85 = sphi 0, %s71
    %s89 = sphi 0, %s89
    %s91 = sphi 0, %s89
    %s92 = sphi 0, %s91
    %s106 = sphi 0, %s92
    %s110 = sphi 0, %s110
    %s112 = sphi 0, %s110
    %s113 = sphi 0, %s112
    %s127 = sphi 0, %s113
    %s131 = sphi 0, %s131
    %s133 = sphi 0, %s131
    %s134 = sphi 0, %s133
    %s148 = sphi 0, %s134
    %s152 = sphi 0, %s152
    %s154 = sphi 0, %s152
    %s155 = sphi 0, %s154
    %s169 = sphi 0, %s155
    %s175 = sphi 0, %s177
    %s178 = sphi 0, %s175
    %s179 = sphi 0, %s178
    %s195 = sphi 0, %s179
  $region4: #{dqn_forward.1} parent=0 // loop_header_branch
    %16 = sbr.rel (%p14) target = $region8
  $region5: #{dqn_forward.1} parent=0 // loop_body
    %s18 = ssub.s32 %s13, 1
    %s19 = ssub.s32 %s13, 2
    %s20 = sadd.s32 %s13, 1
    %s21 = ssub.s32 %s13, %s20
    %p22 = scmp.eq.s32.totalorder %s21, 0
    %s24 = sadd.s32 %s23, 1
    %s25 = scalar_select %p22, %s23, %s24
    %p28 = pneg %p22
    %p29 = scmp.eq.s32.totalorder %s13, 1
    %p30 = por %p28, %p29
    %p31 = scmp.ne.s32.totalorder %s23, %s26
    %p32 = scmp.eq.s32.totalorder %s13, 0
    %p33 = por %p31, %p32
    %p34 = scmp.ne.s32.totalorder %s23, %s26
    %p35 = scmp.eq.s32.totalorder %s18, 1
    %p36 = por %p34, %p35
    %p37 = scmp.ne.s32.totalorder %s26, %s27
    %p38 = scmp.eq.s32.totalorder %s18, 0
    %p39 = por %p37, %p38
    %p40 = scmp.ne.s32.totalorder %s26, %s27
    %p41 = scmp.eq.s32.totalorder %s19, 1
    %p42 = por %p40, %p41
    %p44 = scmp.ne.s32.totalorder %s27, %s43
    %p45 = scmp.eq.s32.totalorder %s19, 0
    %p46 = por %p44, %p45
    %s48 = sadd.s32 %s47, 1
    %p51 = scmp.eq.s32.totalorder %s13, 1
    %p52 = scmp.ne.s32.totalorder %s47, %s49
    %p53 = scmp.eq.s32.totalorder %s13, 0
    %p54 = por %p52, %p53
    %p55 = scmp.ne.s32.totalorder %s47, %s49
    %p56 = scmp.eq.s32.totalorder %s18, 1
    %p57 = por %p55, %p56
    %p58 = scmp.ne.s32.totalorder %s49, %s50
    %p59 = scmp.eq.s32.totalorder %s18, 0
    %p60 = por %p58, %p59
    %p61 = scmp.ne.s32.totalorder %s49, %s50
    %p62 = scmp.eq.s32.totalorder %s19, 1
    %p63 = por %p61, %p62
    %p65 = scmp.ne.s32.totalorder %s50, %s64
    %p66 = scmp.eq.s32.totalorder %s19, 0
    %p67 = por %p65, %p66
    %s69 = sadd.s32 %s68, 1
    %p72 = scmp.eq.s32.totalorder %s13, 1
    %p73 = scmp.ne.s32.totalorder %s68, %s70
    %p74 = scmp.eq.s32.totalorder %s13, 0
    %p75 = por %p73, %p74
    %p76 = scmp.ne.s32.totalorder %s68, %s70
    %p77 = scmp.eq.s32.totalorder %s18, 1
    %p78 = por %p76, %p77
    %p79 = scmp.ne.s32.totalorder %s70, %s71
    %p80 = scmp.eq.s32.totalorder %s18, 0
    %p81 = por %p79, %p80
    %p82 = scmp.ne.s32.totalorder %s70, %s71
    %p83 = scmp.eq.s32.totalorder %s19, 1
    %p84 = por %p82, %p83
    %p86 = scmp.ne.s32.totalorder %s71, %s85
    %p87 = scmp.eq.s32.totalorder %s19, 0
    %p88 = por %p86, %p87
    %s90 = sadd.s32 %s89, 1
    %p93 = scmp.eq.s32.totalorder %s13, 1
    %p94 = scmp.ne.s32.totalorder %s89, %s91
    %p95 = scmp.eq.s32.totalorder %s13, 0
    %p96 = por %p94, %p95
    %p97 = scmp.ne.s32.totalorder %s89, %s91
    %p98 = scmp.eq.s32.totalorder %s18, 1
    %p99 = por %p97, %p98
    %p100 = scmp.ne.s32.totalorder %s91, %s92
    %p101 = scmp.eq.s32.totalorder %s18, 0
    %p102 = por %p100, %p101
    %p103 = scmp.ne.s32.totalorder %s91, %s92
    %p104 = scmp.eq.s32.totalorder %s19, 1
    %p105 = por %p103, %p104
    %p107 = scmp.ne.s32.totalorder %s92, %s106
    %p108 = scmp.eq.s32.totalorder %s19, 0
    %p109 = por %p107, %p108
    %s111 = sadd.s32 %s110, 1
    %p114 = scmp.eq.s32.totalorder %s13, 1
    %p115 = scmp.ne.s32.totalorder %s110, %s112
    %p116 = scmp.eq.s32.totalorder %s13, 0
    %p117 = por %p115, %p116
    %p118 = scmp.ne.s32.totalorder %s110, %s112
    %p119 = scmp.eq.s32.totalorder %s18, 1
    %p120 = por %p118, %p119
    %p121 = scmp.ne.s32.totalorder %s112, %s113
    %p122 = scmp.eq.s32.totalorder %s18, 0
    %p123 = por %p121, %p122
    %p124 = scmp.ne.s32.totalorder %s112, %s113
    %p125 = scmp.eq.s32.totalorder %s19, 1
    %p126 = por %p124, %p125
    %p128 = scmp.ne.s32.totalorder %s113, %s127
    %p129 = scmp.eq.s32.totalorder %s19, 0
    %p130 = por %p128, %p129
    %s132 = sadd.s32 %s131, 1
    %p135 = scmp.eq.s32.totalorder %s13, 1
    %p136 = scmp.ne.s32.totalorder %s131, %s133
    %p137 = scmp.eq.s32.totalorder %s13, 0
    %p138 = por %p136, %p137
    %p139 = scmp.ne.s32.totalorder %s131, %s133
    %p140 = scmp.eq.s32.totalorder %s18, 1
    %p141 = por %p139, %p140
    %p142 = scmp.ne.s32.totalorder %s133, %s134
    %p143 = scmp.eq.s32.totalorder %s18, 0
    %p144 = por %p142, %p143
    %p145 = scmp.ne.s32.totalorder %s133, %s134
    %p146 = scmp.eq.s32.totalorder %s19, 1
    %p147 = por %p145, %p146
    %p149 = scmp.ne.s32.totalorder %s134, %s148
    %p150 = scmp.eq.s32.totalorder %s19, 0
    %p151 = por %p149, %p150
    %s153 = sadd.s32 %s152, 1
    %p156 = scmp.eq.s32.totalorder %s13, 1
    %p157 = scmp.ne.s32.totalorder %s152, %s154
    %p158 = scmp.eq.s32.totalorder %s13, 0
    %p159 = por %p157, %p158
    %p160 = scmp.ne.s32.totalorder %s152, %s154
    %p161 = scmp.eq.s32.totalorder %s18, 1
    %p162 = por %p160, %p161
    %p163 = scmp.ne.s32.totalorder %s154, %s155
    %p164 = scmp.eq.s32.totalorder %s18, 0
    %p165 = por %p163, %p164
    %p166 = scmp.ne.s32.totalorder %s154, %s155
    %p167 = scmp.eq.s32.totalorder %s19, 1
    %p168 = por %p166, %p167
    %p170 = scmp.ne.s32.totalorder %s155, %s169
    %p171 = scmp.eq.s32.totalorder %s19, 0
    %p172 = por %p170, %p171
    %s173 = ssub.s32 %s13, %s20
    %p174 = scmp.eq.s32.totalorder %s173, 0
    %s176 = sadd.s32 %s175, 1
    %s177 = scalar_select %p174, %s175, %s176
    %p180 = pneg %p174
    %p181 = scmp.eq.s32.totalorder %s13, 1
    %p182 = por %p180, %p181
    %p183 = scmp.ne.s32.totalorder %s175, %s178
    %p184 = scmp.eq.s32.totalorder %s13, 0
    %p185 = por %p183, %p184
    %p186 = scmp.ne.s32.totalorder %s175, %s178
    %p187 = scmp.eq.s32.totalorder %s18, 1
    %p188 = por %p186, %p187
    %p189 = scmp.ne.s32.totalorder %s178, %s179
    %p190 = scmp.eq.s32.totalorder %s18, 0
    %p191 = por %p189, %p190
    %p192 = scmp.ne.s32.totalorder %s178, %s179
    %p193 = scmp.eq.s32.totalorder %s19, 1
    %p194 = por %p192, %p193
    %p196 = scmp.ne.s32.totalorder %s179, %s195
    %p197 = scmp.eq.s32.totalorder %s19, 0
    %p198 = por %p196, %p197
    %p199 = scmp.le.s32.totalorder 1, %s13
    %p200 = scmp.lt.s32.totalorder %s13, 3
    %p201 = pnand %p199, %p200
    %p202 = pneg %p201
    // Predicated region
    $region9: #{dqn_forward.1} parent=5 // pred_check
      _
    $region10: #{dqn_forward.1} parent=5 // pred_check_branch
      %204 = sbr.rel (%p201) target = $region12
    $region11: #{dqn_forward.1} parent=5 // pred_region
      %s205 = ssub.s32 %s13, 1
      // Predicated region
      $region13: #{dqn_forward.1} parent=11 // pred_check
        %p206 = pneg %p60
      $region14: #{dqn_forward.1} parent=11 // pred_check_branch
        %208 = sbr.rel (%p206) target = $region16
      $region15: #{dqn_forward.1} parent=11 // pred_region
        _
      $region16: #{dqn_forward.1} parent=11 // pred_fallthru
        _
      // Predicated region
      $region17: #{dqn_forward.1} parent=11 // pred_check
        %p209 = pneg %p81
      $region18: #{dqn_forward.1} parent=11 // pred_check_branch
        %211 = sbr.rel (%p209) target = $region20
      $region19: #{dqn_forward.1} parent=11 // pred_region
        _
      $region20: #{dqn_forward.1} parent=11 // pred_fallthru
        _
      // Predicated region
      $region21: #{dqn_forward.1} parent=11 // pred_check
        %p212 = pneg %p102
      $region22: #{dqn_forward.1} parent=11 // pred_check_branch
        %214 = sbr.rel (%p212) target = $region24
      $region23: #{dqn_forward.1} parent=11 // pred_region
        _
      $region24: #{dqn_forward.1} parent=11 // pred_fallthru
        _
      // Predicated region
      $region25: #{dqn_forward.1} parent=11 // pred_check
        %p215 = pneg %p123
      $region26: #{dqn_forward.1} parent=11 // pred_check_branch
        %217 = sbr.rel (%p215) target = $region28
      $region27: #{dqn_forward.1} parent=11 // pred_region
        _
      $region28: #{dqn_forward.1} parent=11 // pred_fallthru
        _
      // Predicated region
      $region29: #{dqn_forward.1} parent=11 // pred_check
        %p218 = pneg %p144
      $region30: #{dqn_forward.1} parent=11 // pred_check_branch
        %220 = sbr.rel (%p218) target = $region32
      $region31: #{dqn_forward.1} parent=11 // pred_region
        _
      $region32: #{dqn_forward.1} parent=11 // pred_fallthru
        _
      // Predicated region
      $region33: #{dqn_forward.1} parent=11 // pred_check
        %p221 = pneg %p165
      $region34: #{dqn_forward.1} parent=11 // pred_check_branch
        %223 = sbr.rel (%p221) target = $region36
      $region35: #{dqn_forward.1} parent=11 // pred_region
        _
      $region36: #{dqn_forward.1} parent=11 // pred_fallthru
        _
    $region12: #{dqn_forward.1} parent=5 // pred_fallthru
      _
    %p224 = scmp.lt.s32.totalorder %s13, 2
    // Predicated region
    $region37: #{dqn_forward.1} parent=5 // pred_check
      %p225 = pneg %p224
    $region38: #{dqn_forward.1} parent=5 // pred_check_branch
      %227 = sbr.rel (%p225) target = $region40
    $region39: #{dqn_forward.1} parent=5 // pred_region
      // Predicated region
      $region41: #{dqn_forward.1} parent=39 // pred_check
        %p228 = pneg %p33
      $region42: #{dqn_forward.1} parent=39 // pred_check_branch
        %230 = sbr.rel (%p228) target = $region44
      $region43: #{dqn_forward.1} parent=39 // pred_region
        %s231 = smul.u32 16, %s13
        %p232 = scmp.lt.s32.totalorder %s231, 31
        %s233 = scalar_select %p232, %s231, 31
        %s234 = smul.addr %s233, 8
        %s235 = scalar_lea.vmem %s0, %s234
        %s236 = smul.u32 16, %s13
      $region44: #{dqn_forward.1} parent=39 // pred_fallthru
        _
    $region40: #{dqn_forward.1} parent=5 // pred_fallthru
      _
    %p237 = scmp.le.s32.totalorder 1, %s13
    %p238 = scmp.lt.s32.totalorder %s13, 3
    %p239 = pnand %p237, %p238
    %p240 = pneg %p239
    // Predicated region
    $region45: #{dqn_forward.1} parent=5 // pred_check
      _
    $region46: #{dqn_forward.1} parent=5 // pred_check_branch
      %242 = sbr.rel (%p239) target = $region48
    $region47: #{dqn_forward.1} parent=5 // pred_region
      %s243 = ssub.s32 %s13, 1
      %s244 = smul.u32 16, %s18
      %p245 = scmp.lt.s32.totalorder %s244, 31
      %s246 = scalar_select %p245, %s244, 31
      %s247 = smul.addr %s246, 8
      %s248 = scalar_lea.vmem %s0, %s247
      %p249 = pneg %p39
      %p250 = pneg %p36
      %p251 = pneg %p60
      %p252 = pneg %p57
      %p253 = pneg %p81
      %p254 = pneg %p78
      %p255 = pneg %p102
      %p256 = pneg %p99
      %p257 = pneg %p123
      %p258 = pneg %p120
      %p259 = pneg %p144
      %p260 = pneg %p141
      %p261 = pneg %p165
      %p262 = pneg %p162
      %p263 = pneg %p191
      %p264 = pneg %p188
      %s265 = smul.u32 16, %s18
      %p266 = scmp.lt.s32.totalorder %s265, 31
      %s267 = scalar_select %p266, %s265, 31
      %s268 = smul.addr %s267, 8
      %s269 = scalar_lea.vmem %s7, %s268
      %s270 = smul.u32 16, %s18
      %p271 = scmp.lt.s32.totalorder %s270, 31
      %s272 = scalar_select %p271, %s270, 31
      %s273 = smul.addr %s272, 8
      %s274 = scalar_lea.vmem %s0, %s273
      %s275 = smul.u32 16, %s18
      %s276 = smul.u32 16, %s18
      %p277 = scmp.lt.s32.totalorder %s276, 31
      %s278 = scalar_select %p277, %s276, 31
      %s279 = smul.addr %s278, 8
      %s280 = scalar_lea.vmem %s7, %s279
      %s281 = smul.u32 16, %s18
      %v282 = vld [vmem:[%s274] sm:$0xff]
      %v283 = vld [vmem:[%s274 + $0x8] sm:$0xff]
      %v284 = vld [vmem:[%s274 + $0x10] sm:$0xff]
      %v285 = vld [vmem:[%s274 + $0x18] sm:$0xff]
      %v286 = vld [vmem:[%s274 + $0x20] sm:$0xff]
      %v287 = vld [vmem:[%s274 + $0x28] sm:$0xff]
      %v288 = vld [vmem:[%s274 + $0x30] sm:$0xff]
      %v289 = vld [vmem:[%s274 + $0x38] sm:$0xff]
      %v290 = vld [vmem:[%s274 + $0x40] sm:$0xff]
      %v291 = vld [vmem:[%s274 + $0x48] sm:$0xff]
      %v292 = vld [vmem:[%s274 + $0x50] sm:$0xff]
      %v293 = vld [vmem:[%s274 + $0x58] sm:$0xff]
      %v294 = vld [vmem:[%s274 + $0x60] sm:$0xff]
      %v295 = vld [vmem:[%s274 + $0x68] sm:$0xff]
      %v296 = vld [vmem:[%s274 + $0x70] sm:$0xff]
      %v297 = vld [vmem:[%s274 + $0x78] sm:$0xff]
      %v298 = vld [vmem:[%s1] sm:$0xf]
      %v299 = vld [vmem:[%s2] sm:$0x1]
      %v301 = vperm.slane %v299, 0
      %vm303 = vcmask 31744
      %v305 = vsel %vm303, %v282, 0
      %v308 = vsel %vm303, %v283, 0
      %v311 = vsel %vm303, %v284, 0
      %v314 = vsel %vm303, %v285, 0
      %v317 = vsel %vm303, %v286, 0
      %v320 = vsel %vm303, %v287, 0
      %v323 = vsel %vm303, %v288, 0
      %v326 = vsel %vm303, %v289, 0
      %v329 = vsel %vm303, %v290, 0
      %v332 = vsel %vm303, %v291, 0
      %v335 = vsel %vm303, %v292, 0
      %v338 = vsel %vm303, %v293, 0
      %v341 = vsel %vm303, %v294, 0
      %v344 = vsel %vm303, %v295, 0
      %v347 = vsel %vm303, %v296, 0
      %v350 = vsel %vm303, %v297, 0
      %vm352 = vcmask 1043456
      %v354 = vsel %vm352, %v298, 0
      %356 = vmatpush.msra.mxu0 0.0
      %357 = vmatpush.msra.mxu0 0.0
      %358 = vmatpush.msra.mxu0 0.0
      %359 = vmatpush.msra.mxu0 0.0
      %360 = vmatpush.msra.mxu0 0.0
      %361 = vmatpush.msra.mxu0 0.0
      %362 = vmatpush.msra.mxu0 0.0
      %363 = vmatpush.msra.mxu0 0.0
      %364 = vmatpush.msra.mxu0 0.0
      %365 = vmatpush.msra.mxu0 0.0
      %366 = vmatpush.msra.mxu0 0.0
      %367 = vmatpush.msra.mxu0 0.0
      %368 = vmatpush.msra.mxu0 0.0
      %369 = vmatpush.msra.mxu0 0.0
      %370 = vmatpush.msra.mxu0 0.0
      %371 = vmatpush.msra.mxu0 %v354
      %372 = vmatmul.f32.gmra.mxu0 %v305
      %v373 = vpop.f32.mrf.mxu0
      %v374 = vadd.f32 %v301, %v373
      %375 = vmatmul.f32.gmra.mxu0 %v308
      %v376 = vpop.f32.mrf.mxu0
      %v377 = vadd.f32 %v301, %v376
      %378 = vmatmul.f32.gmra.mxu0 %v311
      %v379 = vpop.f32.mrf.mxu0
      %v380 = vadd.f32 %v301, %v379
      %381 = vmatmul.f32.gmra.mxu0 %v314
      %v382 = vpop.f32.mrf.mxu0
      %v383 = vadd.f32 %v301, %v382
      %384 = vmatmul.f32.gmra.mxu0 %v317
      %v385 = vpop.f32.mrf.mxu0
      %v386 = vadd.f32 %v301, %v385
      %387 = vmatmul.f32.gmra.mxu0 %v320
      %v388 = vpop.f32.mrf.mxu0
      %v389 = vadd.f32 %v301, %v388
      %390 = vmatmul.f32.gmra.mxu0 %v323
      %v391 = vpop.f32.mrf.mxu0
      %v392 = vadd.f32 %v301, %v391
      %393 = vmatmul.f32.gmra.mxu0 %v326
      %v394 = vpop.f32.mrf.mxu0
      %v395 = vadd.f32 %v301, %v394
      %396 = vmatmul.f32.gmra.mxu0 %v329
      %v397 = vpop.f32.mrf.mxu0
      %v398 = vadd.f32 %v301, %v397
      %399 = vmatmul.f32.gmra.mxu0 %v332
      %v400 = vpop.f32.mrf.mxu0
      %v401 = vadd.f32 %v301, %v400
      %402 = vmatmul.f32.gmra.mxu0 %v335
      %v403 = vpop.f32.mrf.mxu0
      %v404 = vadd.f32 %v301, %v403
      %405 = vmatmul.f32.gmra.mxu0 %v338
      %v406 = vpop.f32.mrf.mxu0
      %v407 = vadd.f32 %v301, %v406
      %408 = vmatmul.f32.gmra.mxu0 %v341
      %v409 = vpop.f32.mrf.mxu0
      %v410 = vadd.f32 %v301, %v409
      %411 = vmatmul.f32.gmra.mxu0 %v344
      %v412 = vpop.f32.mrf.mxu0
      %v413 = vadd.f32 %v301, %v412
      %414 = vmatmul.f32.gmra.mxu0 %v347
      %v415 = vpop.f32.mrf.mxu0
      %v416 = vadd.f32 %v301, %v415
      %417 = vmatmul.f32.gmra.mxu0 %v350
      %v418 = vpop.f32.mrf.mxu0
      %v419 = vadd.f32 %v301, %v418
      %420 = vdwg.mxu0
      %v421 = vmax.f32 %v374, 0.0
      %v422 = vmax.f32 %v377, 0.0
      %v423 = vmax.f32 %v380, 0.0
      %v424 = vmax.f32 %v383, 0.0
      %v425 = vmax.f32 %v386, 0.0
      %v426 = vmax.f32 %v389, 0.0
      %v427 = vmax.f32 %v392, 0.0
      %v428 = vmax.f32 %v395, 0.0
      %v429 = vmax.f32 %v398, 0.0
      %v430 = vmax.f32 %v401, 0.0
      %v431 = vmax.f32 %v404, 0.0
      %v432 = vmax.f32 %v407, 0.0
      %v433 = vmax.f32 %v410, 0.0
      %v434 = vmax.f32 %v413, 0.0
      %v435 = vmax.f32 %v416, 0.0
      %v436 = vmax.f32 %v419, 0.0
      %v437 = vld [vmem:[%s3] sm:$0xff]
      %v438 = vld [vmem:[%s3 + $0x8] sm:$0xff]
      %v439 = vld [vmem:[%s3 + $0x10] sm:$0xff]
      %v440 = vld [vmem:[%s3 + $0x18] sm:$0xff]
      %v441 = vld [vmem:[%s3 + $0x20] sm:$0xff]
      %v442 = vld [vmem:[%s3 + $0x28] sm:$0xff]
      %v443 = vld [vmem:[%s3 + $0x30] sm:$0xff]
      %v444 = vld [vmem:[%s3 + $0x38] sm:$0xff]
      %v445 = vld [vmem:[%s3 + $0x40] sm:$0xff]
      %v446 = vld [vmem:[%s3 + $0x48] sm:$0xff]
      %v447 = vld [vmem:[%s3 + $0x50] sm:$0xff]
      %v448 = vld [vmem:[%s3 + $0x58] sm:$0xff]
      %v449 = vld [vmem:[%s3 + $0x60] sm:$0xff]
      %v450 = vld [vmem:[%s3 + $0x68] sm:$0xff]
      %v451 = vld [vmem:[%s3 + $0x70] sm:$0xff]
      %v452 = vld [vmem:[%s3 + $0x78] sm:$0xff]
      %v453 = vld [vmem:[%s4] sm:$0x1]
      %v455 = vperm.slane %v453, 0
      %457 = vmatpush.msra.mxu0 %v452
      %458 = vmatpush.msra.mxu0 %v451
      %459 = vmatpush.msra.mxu0 %v450
      %460 = vmatpush.msra.mxu0 %v449
      %461 = vmatpush.msra.mxu0 %v448
      %462 = vmatpush.msra.mxu0 %v447
      %463 = vmatpush.msra.mxu0 %v446
      %464 = vmatpush.msra.mxu0 %v445
      %465 = vmatpush.msra.mxu0 %v444
      %466 = vmatpush.msra.mxu0 %v443
      %467 = vmatpush.msra.mxu0 %v442
      %468 = vmatpush.msra.mxu0 %v441
      %469 = vmatpush.msra.mxu0 %v440
      %470 = vmatpush.msra.mxu0 %v439
      %471 = vmatpush.msra.mxu0 %v438
      %472 = vmatpush.msra.mxu0 %v437
      %473 = vmatmul.f32.gmra.mxu0 %v421
      %v474 = vpop.f32.mrf.mxu0
      %v475 = vadd.f32 %v455, %v474
      %476 = vmatmul.f32.gmra.mxu0 %v422
      %v477 = vpop.f32.mrf.mxu0
      %v478 = vadd.f32 %v455, %v477
      %479 = vmatmul.f32.gmra.mxu0 %v423
      %v480 = vpop.f32.mrf.mxu0
      %v481 = vadd.f32 %v455, %v480
      %482 = vmatmul.f32.gmra.mxu0 %v424
      %v483 = vpop.f32.mrf.mxu0
      %v484 = vadd.f32 %v455, %v483
      %485 = vmatmul.f32.gmra.mxu0 %v425
      %v486 = vpop.f32.mrf.mxu0
      %v487 = vadd.f32 %v455, %v486
      %488 = vmatmul.f32.gmra.mxu0 %v426
      %v489 = vpop.f32.mrf.mxu0
      %v490 = vadd.f32 %v455, %v489
      %491 = vmatmul.f32.gmra.mxu0 %v427
      %v492 = vpop.f32.mrf.mxu0
      %v493 = vadd.f32 %v455, %v492
      %494 = vmatmul.f32.gmra.mxu0 %v428
      %v495 = vpop.f32.mrf.mxu0
      %v496 = vadd.f32 %v455, %v495
      %497 = vmatmul.f32.gmra.mxu0 %v429
      %v498 = vpop.f32.mrf.mxu0
      %v499 = vadd.f32 %v455, %v498
      %500 = vmatmul.f32.gmra.mxu0 %v430
      %v501 = vpop.f32.mrf.mxu0
      %v502 = vadd.f32 %v455, %v501
      %503 = vmatmul.f32.gmra.mxu0 %v431
      %v504 = vpop.f32.mrf.mxu0
      %v505 = vadd.f32 %v455, %v504
      %506 = vmatmul.f32.gmra.mxu0 %v432
      %v507 = vpop.f32.mrf.mxu0
      %v508 = vadd.f32 %v455, %v507
      %509 = vmatmul.f32.gmra.mxu0 %v433
      %v510 = vpop.f32.mrf.mxu0
      %v511 = vadd.f32 %v455, %v510
      %512 = vmatmul.f32.gmra.mxu0 %v434
      %v513 = vpop.f32.mrf.mxu0
      %v514 = vadd.f32 %v455, %v513
      %515 = vmatmul.f32.gmra.mxu0 %v435
      %v516 = vpop.f32.mrf.mxu0
      %v517 = vadd.f32 %v455, %v516
      %518 = vmatmul.f32.gmra.mxu0 %v436
      %v519 = vpop.f32.mrf.mxu0
      %v520 = vadd.f32 %v455, %v519
      %521 = vdwg.mxu0
      %v522 = vmax.f32 %v475, 0.0
      %v523 = vmax.f32 %v478, 0.0
      %v524 = vmax.f32 %v481, 0.0
      %v525 = vmax.f32 %v484, 0.0
      %v526 = vmax.f32 %v487, 0.0
      %v527 = vmax.f32 %v490, 0.0
      %v528 = vmax.f32 %v493, 0.0
      %v529 = vmax.f32 %v496, 0.0
      %v530 = vmax.f32 %v499, 0.0
      %v531 = vmax.f32 %v502, 0.0
      %v532 = vmax.f32 %v505, 0.0
      %v533 = vmax.f32 %v508, 0.0
      %v534 = vmax.f32 %v511, 0.0
      %v535 = vmax.f32 %v514, 0.0
      %v536 = vmax.f32 %v517, 0.0
      %v537 = vmax.f32 %v520, 0.0
      %v538 = vld [vmem:[%s5] sm:$0xff]
      %v539 = vld [vmem:[%s5 + $0x8] sm:$0xff]
      %v540 = vld [vmem:[%s5 + $0x10] sm:$0xff]
      %v541 = vld [vmem:[%s5 + $0x18] sm:$0xff]
      %v542 = vld [vmem:[%s5 + $0x20] sm:$0xff]
      %v543 = vld [vmem:[%s5 + $0x28] sm:$0xff]
      %v544 = vld [vmem:[%s5 + $0x30] sm:$0xff]
      %v545 = vld [vmem:[%s5 + $0x38] sm:$0xff]
      %v546 = vld [vmem:[%s5 + $0x40] sm:$0xff]
      %v547 = vld [vmem:[%s5 + $0x48] sm:$0xff]
      %v548 = vld [vmem:[%s5 + $0x50] sm:$0xff]
      %v549 = vld [vmem:[%s5 + $0x58] sm:$0xff]
      %v550 = vld [vmem:[%s5 + $0x60] sm:$0xff]
      %v551 = vld [vmem:[%s5 + $0x68] sm:$0xff]
      %v552 = vld [vmem:[%s5 + $0x70] sm:$0xff]
      %v553 = vld [vmem:[%s5 + $0x78] sm:$0xff]
      %v554 = vld [vmem:[%s6] sm:$0x1]
      %v556 = vperm.slane %v554, 0
      %558 = vmatpush.msra.mxu0 %v553
      %559 = vmatpush.msra.mxu0 %v552
      %560 = vmatpush.msra.mxu0 %v551
      %561 = vmatpush.msra.mxu0 %v550
      %562 = vmatpush.msra.mxu0 %v549
      %563 = vmatpush.msra.mxu0 %v548
      %564 = vmatpush.msra.mxu0 %v547
      %565 = vmatpush.msra.mxu0 %v546
      %566 = vmatpush.msra.mxu0 %v545
      %567 = vmatpush.msra.mxu0 %v544
      %568 = vmatpush.msra.mxu0 %v543
      %569 = vmatpush.msra.mxu0 %v542
      %570 = vmatpush.msra.mxu0 %v541
      %571 = vmatpush.msra.mxu0 %v540
      %572 = vmatpush.msra.mxu0 %v539
      %573 = vmatpush.msra.mxu0 %v538
      %574 = vmatmul.f32.gmra.mxu0 %v522
      %v575 = vpop.f32.mrf.mxu0
      %v576 = vadd.f32 %v556, %v575
      %577 = vmatmul.f32.gmra.mxu0 %v523
      %v578 = vpop.f32.mrf.mxu0
      %v579 = vadd.f32 %v556, %v578
      %580 = vmatmul.f32.gmra.mxu0 %v524
      %v581 = vpop.f32.mrf.mxu0
      %v582 = vadd.f32 %v556, %v581
      %583 = vmatmul.f32.gmra.mxu0 %v525
      %v584 = vpop.f32.mrf.mxu0
      %v585 = vadd.f32 %v556, %v584
      %586 = vmatmul.f32.gmra.mxu0 %v526
      %v587 = vpop.f32.mrf.mxu0
      %v588 = vadd.f32 %v556, %v587
      %589 = vmatmul.f32.gmra.mxu0 %v527
      %v590 = vpop.f32.mrf.mxu0
      %v591 = vadd.f32 %v556, %v590
      %592 = vmatmul.f32.gmra.mxu0 %v528
      %v593 = vpop.f32.mrf.mxu0
      %v594 = vadd.f32 %v556, %v593
      %595 = vmatmul.f32.gmra.mxu0 %v529
      %v596 = vpop.f32.mrf.mxu0
      %v597 = vadd.f32 %v556, %v596
      %598 = vmatmul.f32.gmra.mxu0 %v530
      %v599 = vpop.f32.mrf.mxu0
      %v600 = vadd.f32 %v556, %v599
      %601 = vmatmul.f32.gmra.mxu0 %v531
      %v602 = vpop.f32.mrf.mxu0
      %v603 = vadd.f32 %v556, %v602
      %604 = vmatmul.f32.gmra.mxu0 %v532
      %v605 = vpop.f32.mrf.mxu0
      %v606 = vadd.f32 %v556, %v605
      %607 = vmatmul.f32.gmra.mxu0 %v533
      %v608 = vpop.f32.mrf.mxu0
      %v609 = vadd.f32 %v556, %v608
      %610 = vmatmul.f32.gmra.mxu0 %v534
      %v611 = vpop.f32.mrf.mxu0
      %v612 = vadd.f32 %v556, %v611
      %613 = vmatmul.f32.gmra.mxu0 %v535
      %v614 = vpop.f32.mrf.mxu0
      %v615 = vadd.f32 %v556, %v614
      %616 = vmatmul.f32.gmra.mxu0 %v536
      %v617 = vpop.f32.mrf.mxu0
      %v618 = vadd.f32 %v556, %v617
      %619 = vmatmul.f32.gmra.mxu0 %v537
      %v620 = vpop.f32.mrf.mxu0
      %v621 = vadd.f32 %v556, %v620
      %622 = vdwg.mxu0
      %623 = vst [vmem:[%s280] sm:$0xff] %v576
      %624 = vst [vmem:[%s280 + $0x8] sm:$0xff] %v579
      %625 = vst [vmem:[%s280 + $0x10] sm:$0xff] %v582
      %626 = vst [vmem:[%s280 + $0x18] sm:$0xff] %v585
      %627 = vst [vmem:[%s280 + $0x20] sm:$0xff] %v588
      %628 = vst [vmem:[%s280 + $0x28] sm:$0xff] %v591
      %629 = vst [vmem:[%s280 + $0x30] sm:$0xff] %v594
      %630 = vst [vmem:[%s280 + $0x38] sm:$0xff] %v597
      %631 = vst [vmem:[%s280 + $0x40] sm:$0xff] %v600
      %632 = vst [vmem:[%s280 + $0x48] sm:$0xff] %v603
      %633 = vst [vmem:[%s280 + $0x50] sm:$0xff] %v606
      %634 = vst [vmem:[%s280 + $0x58] sm:$0xff] %v609
      %635 = vst [vmem:[%s280 + $0x60] sm:$0xff] %v612
      %636 = vst [vmem:[%s280 + $0x68] sm:$0xff] %v615
      %637 = vst [vmem:[%s280 + $0x70] sm:$0xff] %v618
      %638 = vst [vmem:[%s280 + $0x78] sm:$0xff] %v621
      %s639 = smul.u32 16, %s18
      %p640 = scmp.lt.s32.totalorder %s639, 31
      %s641 = scalar_select %p640, %s639, 31
      %s642 = smul.addr %s641, 8
      %s643 = scalar_lea.vmem %s7, %s642
      // Predicated region
      $region49: #{dqn_forward.1} parent=47 // pred_check
        %p644 = pneg %p188
      $region50: #{dqn_forward.1} parent=47 // pred_check_branch
        %646 = sbr.rel (%p644) target = $region52
      $region51: #{dqn_forward.1} parent=47 // pred_region
        %s647 = smul.u32 16, %s18
      $region52: #{dqn_forward.1} parent=47 // pred_fallthru
        _
    $region48: #{dqn_forward.1} parent=5 // pred_fallthru
      _
    %p648 = scmp.le.s32.totalorder 2, %s13
    // Predicated region
    $region53: #{dqn_forward.1} parent=5 // pred_check
      %p649 = pneg %p648
    $region54: #{dqn_forward.1} parent=5 // pred_check_branch
      %651 = sbr.rel (%p649) target = $region56
    $region55: #{dqn_forward.1} parent=5 // pred_region
      %s652 = ssub.s32 %s13, 2
      // Predicated region
      $region57: #{dqn_forward.1} parent=55 // pred_check
        %p653 = pneg %p194
      $region58: #{dqn_forward.1} parent=55 // pred_check_branch
        %655 = sbr.rel (%p653) target = $region60
      $region59: #{dqn_forward.1} parent=55 // pred_region
        %s656 = smul.u32 16, %s19
        %p657 = scmp.lt.s32.totalorder %s656, 31
        %s658 = scalar_select %p657, %s656, 31
        %s659 = smul.addr %s658, 8
        %s660 = scalar_lea.vmem %s7, %s659
      $region60: #{dqn_forward.1} parent=55 // pred_fallthru
        _
    $region56: #{dqn_forward.1} parent=5 // pred_fallthru
      _
  $region6: #{dqn_forward.1} parent=0 // loop_footer
    %s17 = sadd.s32 1, %s13
  $region7: #{dqn_forward.1} parent=0 // loop_footer_branch
    %12 = sbr.rel target = $region3
  $region8: #{dqn_forward.1} parent=0 // loop_exit
    _

</llo_original>
